<compile_context>
chip_gen: v7x
topology: tpu7x:2x2x1
jax: 0.10.0
libtpu: 0.0.40
codegen_flags: <defaults>
</compile_context>

<pallas_src>
import functools

import jax
import jax.numpy as jnp
from jax.experimental import pallas as pl
from jax.experimental.pallas import tpu as pltpu

EPS = 1e-5
_MIB = 1024 * 1024


# ---------------------------------------------------------------------------
# Helpers
# ---------------------------------------------------------------------------
def _round_up(n, m):
    return ((n + m - 1) // m) * m


def _sublane(itemsize):
    # Sublane packing per vreg: f32 -> 8, bf16 -> 16, int8/fp8 -> 32.
    return max(8, 32 // int(itemsize))


def _tpu_budgets():
    """Returns (vmem_working_budget, vmem_limit_cap, large_vmem?)."""
    try:
        vmem_cap = int(pltpu.get_tpu_info().vmem_capacity_bytes)
    except Exception:
        vmem_cap = 64 * _MIB                # conservative: assume v7x-like
    large_vmem = vmem_cap >= 100 * _MIB     # v5e / v6e: 128 MiB physical
    if large_vmem:
        return 72 * _MIB, 96 * _MIB, True   # ~8-9 MiB f32 input blocks
    return 30 * _MIB, 48 * _MIB, False      # v7x: ~4 MiB input blocks


# ---------------------------------------------------------------------------
# Kernels
# ---------------------------------------------------------------------------
def _ln_kernel(x_ref, w_ref, b_ref, o_ref, *, c):
    """General path: x_ref (T, C), w_ref/b_ref (1, C) f32, o_ref (T, C).

    Two-pass statistics (mu first, then centered second moment) to avoid the
    E[x^2] - mu^2 cancellation for strongly offset inputs.
    """
    x = x_ref[...].astype(jnp.float32)
    inv_c = 1.0 / c
    mu = jnp.sum(x, axis=-1, keepdims=True) * inv_c
    d = x - mu
    var = jnp.sum(d * d, axis=-1, keepdims=True) * inv_c   # unbiased=False
    inv = jax.lax.rsqrt(var + EPS)
    o_ref[...] = (d * inv * w_ref[...] + b_ref[...]).astype(o_ref.dtype)


def _seg_sum(v, p):
    """Segmented lane sums via MXU: v (T, 128) f32, p (128, 128) bf16 0/1.

    Exact hi/lo bf16 split keeps relative error ~2^-16 while staying lane-dense
    and bf16 (v7x MXU has no integer path).  Result is already broadcast back
    over each c-wide segment because p is block-diagonal ones.
    """
    v_hi = v.astype(jnp.bfloat16)
    v_lo = (v - v_hi.astype(jnp.float32)).astype(jnp.bfloat16)
    return (jnp.dot(v_hi, p, preferred_element_type=jnp.float32)
            + jnp.dot(v_lo, p, preferred_element_type=jnp.float32))


def _ln_packed_kernel(x_ref, w_ref, b_ref, p_ref, o_ref, *, c):
    """Packed path: k = 128 // c original rows folded per 128-lane super-row."""
    x = x_ref[...].astype(jnp.float32)          # (T, 128)
    p = p_ref[...]                              # (128, 128) bf16 block-diagonal
    inv_c = 1.0 / c
    mu = _seg_sum(x, p) * inv_c                 # per-segment mean, broadcast
    d = x - mu
    var = jnp.maximum(_seg_sum(d * d, p) * inv_c, 0.0)
    inv = jax.lax.rsqrt(var + EPS)
    o_ref[...] = (d * inv * w_ref[...] + b_ref[...]).astype(o_ref.dtype)


# ---------------------------------------------------------------------------
# Wrapper
# ---------------------------------------------------------------------------
def withbias_layernorm(x, weight, bias):
    """LayerNorm over the last dim of x (any leading shape), with bias."""
    orig_shape = x.shape
    c = orig_shape[-1]
    rows = 1
    for d in orig_shape[:-1]:
        rows *= d
    x2 = x.reshape(rows, c)

    w32 = weight.astype(jnp.float32)
    b32 = bias.astype(jnp.float32)

    itemsize = int(jnp.dtype(x.dtype).itemsize)
    sub = _sublane(itemsize)
    work_budget, vmem_cap_limit, large_vmem = _tpu_budgets()

    # Lane-dense packed path whenever C underfills the 128-lane vreg width.
    packed = (c < 128) and (128 % c == 0) and rows > 0
    pad_rows = 0
    if packed:
        k = 128 // c
        lanes = 128
        if rows % k:
            # Tiny (< k rows) zero pad so the reshape below is valid; keeps the
            # hot pallas_call lane-dense instead of falling back to masked
            # vst.msk partial stores with (128-c)/128 of every vreg wasted.
            pad_rows = k - rows % k
            x2 = jnp.concatenate(
                [x2, jnp.zeros((pad_rows, c), dtype=x2.dtype)], axis=0)
        r_eff = (rows + pad_rows) // k
        x2 = x2.reshape(r_eff, lanes)                 # contiguous: free reshape
        w_in = jnp.tile(w32, k).reshape(1, lanes)
        b_in = jnp.tile(b32, k).reshape(1, lanes)
        seg = jnp.arange(lanes, dtype=jnp.int32) // c
        p = (seg[:, None] == seg[None, :]).astype(jnp.bfloat16)  # exact 0/1
    else:
        lanes = c
        r_eff = rows
        w_in = w32.reshape(1, c)
        b_in = b32.reshape(1, c)

    # Row tiling sized against the VMEM working set:
    #   2x input double-buffer + 2x output double-buffer + ~4 block-sized f32
    #   temporaries (x cast, centered d, d*d, matmul/scale results).
    per_row_bytes = lanes * (2 * itemsize + 2 * itemsize + 4 * 4)
    tile_rows = max(sub, (work_budget // per_row_bytes) // sub * sub)
    rows_cap = max(sub, _round_up(r_eff, sub))
    tile_rows = min(tile_rows, rows_cap)
    if not large_vmem:
        # v7x: 2 TensorCores share the chip; keep the (parallel) grid at >= ~8
        # steps so both cores stay fed.  No effect on single-TC v5e/v6e.
        min_steps = 8
        tile_rows = min(tile_rows,
                        max(sub, _round_up(pl.cdiv(r_eff, min_steps), sub)))
    grid = (pl.cdiv(r_eff, tile_rows),)   # ragged last block clipped by Pallas

    working_set = tile_rows * per_row_bytes + 2 * _MIB   # + p/w/b + slack
    vmem_limit = int(min(vmem_cap_limit, max(32 * _MIB, working_set)))

    row_spec = pl.BlockSpec((tile_rows, lanes), lambda i: (i, 0))
    vec_spec = pl.BlockSpec((1, lanes), lambda i: (0, 0))

    if packed:
        kern = functools.partial(_ln_packed_kernel, c=c)
        in_specs = [row_spec, vec_spec, vec_spec,
                    pl.BlockSpec((lanes, lanes), lambda i: (0, 0))]
        args = (x2, w_in, b_in, p)
    else:
        kern = functools.partial(_ln_kernel, c=c)
        in_specs = [row_spec, vec_spec, vec_spec]
        args = (x2, w_in, b_in)

    cost = pl.CostEstimate(
        flops=10 * rows * c,
        transcendentals=rows,
        bytes_accessed=2 * rows * c * itemsize,
    )
    cparams = pltpu.CompilerParams(
        dimension_semantics=(pltpu.PARALLEL,),
        vmem_limit_bytes=vmem_limit,
    )

    out = pl.pallas_call(
        kern,
        out_shape=jax.ShapeDtypeStruct((r_eff, lanes), x.dtype),
        grid_spec=pltpu.PrefetchScalarGridSpec(
            num_scalar_prefetch=0,
            grid=grid,
            in_specs=in_specs,
            out_specs=row_spec,
        ),
        compiler_params=cparams,
        cost_estimate=cost,
    )(*args)

    if packed:
        out = out.reshape(rows + pad_rows, c)
        if pad_rows:
            out = out[:rows]
    return out.reshape(orig_shape)


# ---------------------------------------------------------------------------
# Reference + self-test
# ---------------------------------------------------------------------------
def _ref_layernorm(x, weight, bias):
    x32 = x.astype(jnp.float32)
    mu = x32.mean(-1, keepdims=True)
    sigma = ((x32 - mu) ** 2).mean(-1, keepdims=True)
    return ((x32 - mu) / jnp.sqrt(sigma + EPS) * weight + bias).astype(x.dtype)


if __name__ == "__main__":
    key = jax.random.PRNGKey(0)
    kx, kw, kb = jax.random.split(key, 3)

    # Module-default parameters (ones / zeros), packed lane-dense path (C=32).
    B, T, C = 2, 64, 32
    x = jax.random.normal(kx, (B, T, C), dtype=jnp.float32)
    weight = jnp.ones((C,), dtype=jnp.float32)
    bias = jnp.zeros((C,), dtype=jnp.float32)
    out = jax.block_until_ready(withbias_layernorm(x, weight, bias))
    ref = _ref_layernorm(x, weight, bias)
    assert jnp.allclose(out, ref, atol=1e-4, rtol=1e-4), "mismatch (default affine)"

    # Non-trivial affine params exercise the packed weight/bias tiling.
    w_rnd = jax.random.normal(kw, (C,), dtype=jnp.float32)
    b_rnd = jax.random.normal(kb, (C,), dtype=jnp.float32)
    out2 = jax.block_until_ready(withbias_layernorm(x, w_rnd, b_rnd))
    ref2 = _ref_layernorm(x, w_rnd, b_rnd)
    assert jnp.allclose(out2, ref2, atol=1e-4, rtol=1e-4), "mismatch (random affine)"

    # Packed path with rows % k != 0 -> exercises the tiny row pad.
    x_rag = jax.random.normal(kx, (2, 63, C), dtype=jnp.float32)
    out_rag = jax.block_until_ready(withbias_layernorm(x_rag, w_rnd, b_rnd))
    ref_rag = _ref_layernorm(x_rag, w_rnd, b_rnd)
    assert jnp.allclose(out_rag, ref_rag, atol=1e-4, rtol=1e-4), "mismatch (ragged packed)"

    # General (non-packed) path: C already a multiple of 128.
    C3 = 128
    x3 = jax.random.normal(kx, (4, 8, C3), dtype=jnp.float32)
    w3 = jax.random.normal(kw, (C3,), dtype=jnp.float32)
    b3 = jax.random.normal(kb, (C3,), dtype=jnp.float32)
    out3 = jax.block_until_ready(withbias_layernorm(x3, w3, b3))
    ref3 = _ref_layernorm(x3, w3, b3)
    assert jnp.allclose(out3, ref3, atol=1e-4, rtol=1e-4), "mismatch (general path)"

    # bf16 input exercises the dtype-aware (16-row) sublane rounding.
    x4 = jax.random.normal(kx, (2, 32, C3), dtype=jnp.float32).astype(jnp.bfloat16)
    out4 = jax.block_until_ready(withbias_layernorm(x4, w3, b3))
    ref4 = _ref_layernorm(x4, w3, b3)
    assert jnp.allclose(out4.astype(jnp.float32), ref4.astype(jnp.float32),
                        atol=3e-2, rtol=3e-2), "mismatch (bf16 path)"

    print("KERNEL_OK")
</pallas_src>

<mosaic_0001>
module attributes {stable_mosaic.version = 11 : i64} {
  func.func @_ln_packed_kernel(%arg0: i32, %arg1: memref<8x128xf32, #tpu.memory_space<vmem>>, %arg2: memref<1x128xf32, #tpu.memory_space<vmem>>, %arg3: memref<1x128xf32, #tpu.memory_space<vmem>>, %arg4: memref<128x128xbf16, #tpu.memory_space<vmem>>, %arg5: memref<8x128xf32, #tpu.memory_space<vmem>>) attributes {dimension_semantics = [#tpu.dimension_semantics<parallel>], iteration_bounds = array<i64: 4>, scalar_prefetch = 0 : i64, scratch_operands = 0 : i64, tpu.core_type = #tpu.core_type<tc>, window_params = [{transform_indices = @transform_0, window_bounds = array<i64: 8, 128>}, {pipeline_mode = #tpu.pipeline_mode<synchronous>, transform_indices = @transform_1, window_bounds = array<i64: 1, 128>}, {pipeline_mode = #tpu.pipeline_mode<synchronous>, transform_indices = @transform_2, window_bounds = array<i64: 1, 128>}, {pipeline_mode = #tpu.pipeline_mode<synchronous>, transform_indices = @transform_3, window_bounds = array<i64: 128, 128>}, {transform_indices = @transform_4, window_bounds = array<i64: 8, 128>}]} {
    %c0 = arith.constant 0 : index
    %c0_0 = arith.constant 0 : index
    %0 = vector.load %arg1[%c0, %c0_0] : memref<8x128xf32, #tpu.memory_space<vmem>>, vector<8x128xf32>
    %c0_1 = arith.constant 0 : index
    %c0_2 = arith.constant 0 : index
    %1 = vector.load %arg4[%c0_1, %c0_2] : memref<128x128xbf16, #tpu.memory_space<vmem>>, vector<128x128xbf16>
    %2 = arith.truncf %0 : vector<8x128xf32> to vector<8x128xbf16>
    %3 = arith.extf %2 : vector<8x128xbf16> to vector<8x128xf32>
    %4 = arith.subf %0, %3 : vector<8x128xf32>
    %5 = arith.truncf %4 : vector<8x128xf32> to vector<8x128xbf16>
    %cst = arith.constant dense<0.000000e+00> : vector<8x128xf32>
    %6 = tpu.matmul %2, %1, %cst {dimension_numbers = #tpu.dot_dimension_numbers<[1], [0], [0], [1], [0, 0, 1, 1], [], []>} : vector<8x128xbf16>, vector<128x128xbf16>, vector<8x128xf32> -> vector<8x128xf32>
    %cst_3 = arith.constant dense<0.000000e+00> : vector<8x128xf32>
    %7 = tpu.matmul %5, %1, %cst_3 {dimension_numbers = #tpu.dot_dimension_numbers<[1], [0], [0], [1], [0, 0, 1, 1], [], []>} : vector<8x128xbf16>, vector<128x128xbf16>, vector<8x128xf32> -> vector<8x128xf32>
    %8 = arith.addf %6, %7 : vector<8x128xf32>
    %cst_4 = arith.constant 3.125000e-02 : f32
    %9 = vector.broadcast %cst_4 : f32 to vector<8x128xf32>
    %10 = arith.mulf %8, %9 : vector<8x128xf32>
    %11 = arith.subf %0, %10 : vector<8x128xf32>
    %12 = arith.mulf %11, %11 : vector<8x128xf32>
    %13 = arith.truncf %12 : vector<8x128xf32> to vector<8x128xbf16>
    %14 = arith.extf %13 : vector<8x128xbf16> to vector<8x128xf32>
    %15 = arith.subf %12, %14 : vector<8x128xf32>
    %16 = arith.truncf %15 : vector<8x128xf32> to vector<8x128xbf16>
    %cst_5 = arith.constant dense<0.000000e+00> : vector<8x128xf32>
    %17 = tpu.matmul %13, %1, %cst_5 {dimension_numbers = #tpu.dot_dimension_numbers<[1], [0], [0], [1], [0, 0, 1, 1], [], []>} : vector<8x128xbf16>, vector<128x128xbf16>, vector<8x128xf32> -> vector<8x128xf32>
    %cst_6 = arith.constant dense<0.000000e+00> : vector<8x128xf32>
    %18 = tpu.matmul %16, %1, %cst_6 {dimension_numbers = #tpu.dot_dimension_numbers<[1], [0], [0], [1], [0, 0, 1, 1], [], []>} : vector<8x128xbf16>, vector<128x128xbf16>, vector<8x128xf32> -> vector<8x128xf32>
    %19 = arith.addf %17, %18 : vector<8x128xf32>
    %cst_7 = arith.constant 3.125000e-02 : f32
    %20 = vector.broadcast %cst_7 : f32 to vector<8x128xf32>
    %21 = arith.mulf %19, %20 : vector<8x128xf32>
    %cst_8 = arith.constant 0.000000e+00 : f32
    %22 = vector.broadcast %cst_8 : f32 to vector<8x128xf32>
    %23 = arith.maximumf %21, %22 : vector<8x128xf32>
    %cst_9 = arith.constant 9.99999974E-6 : f32
    %24 = vector.broadcast %cst_9 : f32 to vector<8x128xf32>
    %25 = arith.addf %23, %24 : vector<8x128xf32>
    %26 = math.rsqrt %25 : vector<8x128xf32>
    %27 = arith.mulf %11, %26 : vector<8x128xf32>
    %c0_10 = arith.constant 0 : index
    %c0_11 = arith.constant 0 : index
    %28 = vector.load %arg2[%c0_10, %c0_11] : memref<1x128xf32, #tpu.memory_space<vmem>>, vector<1x128xf32>
    %29 = vector.broadcast %28 : vector<1x128xf32> to vector<8x128xf32>
    %30 = arith.mulf %27, %29 : vector<8x128xf32>
    %c0_12 = arith.constant 0 : index
    %c0_13 = arith.constant 0 : index
    %31 = vector.load %arg3[%c0_12, %c0_13] : memref<1x128xf32, #tpu.memory_space<vmem>>, vector<1x128xf32>
    %32 = vector.broadcast %31 : vector<1x128xf32> to vector<8x128xf32>
    %33 = arith.addf %30, %32 : vector<8x128xf32>
    %c0_14 = arith.constant 0 : index
    %c0_15 = arith.constant 0 : index
    %34 = vector.load %arg5[%c0_14, %c0_15] : memref<8x128xf32, #tpu.memory_space<vmem>>, vector<8x128xf32>
    tpu.vector_store %arg5[%c0_14, %c0_15], %33 {strides = array<i32>} : memref<8x128xf32, #tpu.memory_space<vmem>>, vector<8x128xf32>,
    return
  }
  func.func @transform_0(%arg0: i32) -> (i32, i32) {
    %c0_i32 = arith.constant 0 : i32
    %c0_i32_0 = arith.constant 0 : i32
    return %arg0, %c0_i32 : i32, i32
  }
  func.func @transform_1(%arg0: i32) -> (i32, i32) {
    %c0_i32 = arith.constant 0 : i32
    %c0_i32_0 = arith.constant 0 : i32
    %c0_i32_1 = arith.constant 0 : i32
    return %c0_i32, %c0_i32_0 : i32, i32
  }
  func.func @transform_2(%arg0: i32) -> (i32, i32) {
    %c0_i32 = arith.constant 0 : i32
    %c0_i32_0 = arith.constant 0 : i32
    %c0_i32_1 = arith.constant 0 : i32
    return %c0_i32, %c0_i32_0 : i32, i32
  }
  func.func @transform_3(%arg0: i32) -> (i32, i32) {
    %c0_i32 = arith.constant 0 : i32
    %c0_i32_0 = arith.constant 0 : i32
    %c0_i32_1 = arith.constant 0 : i32
    return %c0_i32, %c0_i32_0 : i32, i32
  }
  func.func @transform_4(%arg0: i32) -> (i32, i32) {
    %c0_i32 = arith.constant 0 : i32
    %c0_i32_0 = arith.constant 0 : i32
    return %arg0, %c0_i32 : i32, i32
  }
}

</mosaic_0001>

<llo_original>
// kernel: tpu_custom_call.1
$region0: #{tpu_custom_call.1}
  #allocation0 [shape = 'u32[]', space=smem, size = 0x4, offset = 0x4, fixed_abs, tag = 'smem constant byte address 0x4 - core index']
  #allocation1 [shape = 'u32[144,128]{1,0:T(1,128)}', space=vmem, size = 0x12000, scoped, tag = 'internal scratch']
  %s0 = inlined_call_operand.hbm [shape: f32[32,128], index: 0, kind: input, shape index: {}]
  %s1 = inlined_call_operand.vmem [shape: f32[1,128], index: 1, kind: input, shape index: {}]
  %s2 = inlined_call_operand.vmem [shape: f32[1,128], index: 2, kind: input, shape index: {}]
  %s3 = inlined_call_operand.hbm [shape: bf16[128,128], index: 3, kind: input, shape index: {}]
  %s4 = inlined_call_operand.hbm [shape: f32[32,128], index: 4, kind: output, shape index: {}]
  %s5 = sld [smem:[#allocation0]]
  $region57: #{tpu_custom_call.1} parent=0
    _
  %s7 = ssub.s32 1, %s5
  %s8 = scalar_select 0, %s7, %s5
  $region1: #{tpu_custom_call.1} parent=0
    #allocation2 [shape = 'u8[8192]{0}', space=vmem, size = 0x2000, scoped, tag = 'input window, operand 0']
    #allocation3 [shape = 's32[2]{0}', space=sflag, size = 0x8, scoped, tag = 'scoped memory for tpu_custom_call.1']
    #allocation4 [shape = 's32[2]{0}', space=sflag, size = 0x8, scoped, tag = 'scoped memory for tpu_custom_call.1']
    #allocation5 [shape = 'u8[32768]{0}', space=vmem, size = 0x8000, scoped, tag = 'input window, operand 3, single buffered']
    #allocation6 [shape = 's32[1]{0}', space=sflag, size = 0x4, scoped, tag = 'scoped memory for tpu_custom_call.1']
    #allocation7 [shape = 'u8[8192]{0}', space=vmem, size = 0x2000, scoped, tag = 'output window, operand 0']
    %9 = vsyncpa [#allocation3], 0
    %s10 = scalar_lea.sflag [#allocation3], 1
    %11 = vsyncpa %s10, 0
    %12 = vsyncpa [#allocation6], 0
    %13 = vsyncpa [#allocation4], 0
    %s14 = scalar_lea.sflag [#allocation4], 1
    %15 = vsyncpa %s14, 0
    loop: start=0, step=1, limit=6
    $region2: #{tpu_custom_call.1} parent=1 // loop_pre_header
      _
    $region3: #{tpu_custom_call.1} parent=1 // loop_header
      %s17 = sphi 0, %s21
      %p18 = scmp.ge.s32.totalorder %s17, 6
      %s27 = sphi 0, %s29
      %s30 = sphi 0, %s27
      %s31 = sphi 0, %s30
      %s47 = sphi 0, %s31
      %s51 = sphi 0, %s51
      %s53 = sphi 0, %s51
      %s54 = sphi 0, %s53
      %s68 = sphi 0, %s54
      %s72 = sphi 0, %s72
      %s74 = sphi 0, %s72
      %s75 = sphi 0, %s74
      %s89 = sphi 0, %s75
      %s93 = sphi 0, %s93
      %s95 = sphi 0, %s93
      %s96 = sphi 0, %s95
      %s110 = sphi 0, %s96
      %s116 = sphi 0, %s118
      %s119 = sphi 0, %s116
      %s120 = sphi 0, %s119
      %s136 = sphi 0, %s120
    $region4: #{tpu_custom_call.1} parent=1 // loop_header_branch
      %20 = sbr.rel (%p18) target = $region8
    $region5: #{tpu_custom_call.1} parent=1 // loop_body
      %s22 = ssub.s32 %s17, 1
      %s23 = ssub.s32 %s17, 2
      %s24 = sadd.s32 %s17, 1
      %s25 = ssub.s32 %s17, %s24
      %p26 = scmp.eq.s32.totalorder %s25, 0
      %s28 = sadd.s32 %s27, 1
      %s29 = scalar_select %p26, %s27, %s28
      %p32 = pneg %p26
      %p33 = scmp.eq.s32.totalorder %s17, 3
      %p34 = por %p32, %p33
      %p35 = scmp.ne.s32.totalorder %s27, %s30
      %p36 = scmp.eq.s32.totalorder %s17, 0
      %p37 = por %p35, %p36
      %p38 = scmp.ne.s32.totalorder %s27, %s30
      %p39 = scmp.eq.s32.totalorder %s22, 3
      %p40 = por %p38, %p39
      %p41 = scmp.ne.s32.totalorder %s30, %s31
      %p42 = scmp.eq.s32.totalorder %s22, 0
      %p43 = por %p41, %p42
      %p44 = scmp.ne.s32.totalorder %s30, %s31
      %p45 = scmp.eq.s32.totalorder %s23, 3
      %p46 = por %p44, %p45
      %p48 = scmp.ne.s32.totalorder %s31, %s47
      %p49 = scmp.eq.s32.totalorder %s23, 0
      %p50 = por %p48, %p49
      %s52 = sadd.s32 %s51, 1
      %p55 = scmp.eq.s32.totalorder %s17, 3
      %p56 = scmp.ne.s32.totalorder %s51, %s53
      %p57 = scmp.eq.s32.totalorder %s17, 0
      %p58 = por %p56, %p57
      %p59 = scmp.ne.s32.totalorder %s51, %s53
      %p60 = scmp.eq.s32.totalorder %s22, 3
      %p61 = por %p59, %p60
      %p62 = scmp.ne.s32.totalorder %s53, %s54
      %p63 = scmp.eq.s32.totalorder %s22, 0
      %p64 = por %p62, %p63
      %p65 = scmp.ne.s32.totalorder %s53, %s54
      %p66 = scmp.eq.s32.totalorder %s23, 3
      %p67 = por %p65, %p66
      %p69 = scmp.ne.s32.totalorder %s54, %s68
      %p70 = scmp.eq.s32.totalorder %s23, 0
      %p71 = por %p69, %p70
      %s73 = sadd.s32 %s72, 1
      %p76 = scmp.eq.s32.totalorder %s17, 3
      %p77 = scmp.ne.s32.totalorder %s72, %s74
      %p78 = scmp.eq.s32.totalorder %s17, 0
      %p79 = por %p77, %p78
      %p80 = scmp.ne.s32.totalorder %s72, %s74
      %p81 = scmp.eq.s32.totalorder %s22, 3
      %p82 = por %p80, %p81
      %p83 = scmp.ne.s32.totalorder %s74, %s75
      %p84 = scmp.eq.s32.totalorder %s22, 0
      %p85 = por %p83, %p84
      %p86 = scmp.ne.s32.totalorder %s74, %s75
      %p87 = scmp.eq.s32.totalorder %s23, 3
      %p88 = por %p86, %p87
      %p90 = scmp.ne.s32.totalorder %s75, %s89
      %p91 = scmp.eq.s32.totalorder %s23, 0
      %p92 = por %p90, %p91
      %s94 = sadd.s32 %s93, 1
      %p97 = scmp.eq.s32.totalorder %s17, 3
      %p98 = scmp.ne.s32.totalorder %s93, %s95
      %p99 = scmp.eq.s32.totalorder %s17, 0
      %p100 = por %p98, %p99
      %p101 = scmp.ne.s32.totalorder %s93, %s95
      %p102 = scmp.eq.s32.totalorder %s22, 3
      %p103 = por %p101, %p102
      %p104 = scmp.ne.s32.totalorder %s95, %s96
      %p105 = scmp.eq.s32.totalorder %s22, 0
      %p106 = por %p104, %p105
      %p107 = scmp.ne.s32.totalorder %s95, %s96
      %p108 = scmp.eq.s32.totalorder %s23, 3
      %p109 = por %p107, %p108
      %p111 = scmp.ne.s32.totalorder %s96, %s110
      %p112 = scmp.eq.s32.totalorder %s23, 0
      %p113 = por %p111, %p112
      %s114 = ssub.s32 %s17, %s24
      %p115 = scmp.eq.s32.totalorder %s114, 0
      %s117 = sadd.s32 %s116, 1
      %s118 = scalar_select %p115, %s116, %s117
      %p121 = pneg %p115
      %p122 = scmp.eq.s32.totalorder %s17, 3
      %p123 = por %p121, %p122
      %p124 = scmp.ne.s32.totalorder %s116, %s119
      %p125 = scmp.eq.s32.totalorder %s17, 0
      %p126 = por %p124, %p125
      %p127 = scmp.ne.s32.totalorder %s116, %s119
      %p128 = scmp.eq.s32.totalorder %s22, 3
      %p129 = por %p127, %p128
      %p130 = scmp.ne.s32.totalorder %s119, %s120
      %p131 = scmp.eq.s32.totalorder %s22, 0
      %p132 = por %p130, %p131
      %p133 = scmp.ne.s32.totalorder %s119, %s120
      %p134 = scmp.eq.s32.totalorder %s23, 3
      %p135 = por %p133, %p134
      %p137 = scmp.ne.s32.totalorder %s120, %s136
      %p138 = scmp.eq.s32.totalorder %s23, 0
      %p139 = por %p137, %p138
      %p140 = scmp.le.s32.totalorder 1, %s17
      %p141 = scmp.lt.s32.totalorder %s17, 5
      %p142 = pnand %p140, %p141
      %p143 = pneg %p142
      // Predicated region
      $region9: #{tpu_custom_call.1} parent=5 // pred_check
        _
      $region10: #{tpu_custom_call.1} parent=5 // pred_check_branch
        %145 = sbr.rel (%p142) target = $region12
      $region11: #{tpu_custom_call.1} parent=5 // pred_region
        %s146 = ssub.s32 %s17, 1
        // Predicated region
        $region13: #{tpu_custom_call.1} parent=11 // pred_check
          %p147 = pneg %p64
        $region14: #{tpu_custom_call.1} parent=11 // pred_check_branch
          %149 = sbr.rel (%p147) target = $region16
        $region15: #{tpu_custom_call.1} parent=11 // pred_region
          _
        $region16: #{tpu_custom_call.1} parent=11 // pred_fallthru
          _
        // Predicated region
        $region17: #{tpu_custom_call.1} parent=11 // pred_check
          %p150 = pneg %p85
        $region18: #{tpu_custom_call.1} parent=11 // pred_check_branch
          %152 = sbr.rel (%p150) target = $region20
        $region19: #{tpu_custom_call.1} parent=11 // pred_region
          _
        $region20: #{tpu_custom_call.1} parent=11 // pred_fallthru
          _
        // Predicated region
        $region21: #{tpu_custom_call.1} parent=11 // pred_check
          %p153 = pneg %p106
        $region22: #{tpu_custom_call.1} parent=11 // pred_check_branch
          %155 = sbr.rel (%p153) target = $region24
        $region23: #{tpu_custom_call.1} parent=11 // pred_region
          %s157 = ssub.s32 1024, 1024
          %158 = vsyncadd [#allocation6], %s157
          %s159 = sshll.u32 [#allocation5], 4
          %s160 = int_to_ptr.vmem [resolvable:$true] %s159
          %165 = dma.hbm_to_vmem [thread:$0]  %s3, 1024, %s160, [#allocation6], 64, 64, 4
        $region24: #{tpu_custom_call.1} parent=11 // pred_fallthru
          _
      $region12: #{tpu_custom_call.1} parent=5 // pred_fallthru
        _
      %p166 = scmp.lt.s32.totalorder %s17, 4
      // Predicated region
      $region25: #{tpu_custom_call.1} parent=5 // pred_check
        %p167 = pneg %p166
      $region26: #{tpu_custom_call.1} parent=5 // pred_check_branch
        %169 = sbr.rel (%p167) target = $region28
      $region27: #{tpu_custom_call.1} parent=5 // pred_region
        // Predicated region
        $region29: #{tpu_custom_call.1} parent=27 // pred_check
          %p170 = pneg %p37
        $region30: #{tpu_custom_call.1} parent=27 // pred_check_branch
          %172 = sbr.rel (%p170) target = $region32
        $region31: #{tpu_custom_call.1} parent=27 // pred_region
          %s173 = sand.u32 %s27, 1
          %s174 = scalar_lea.sflag [#allocation3], %s173
          %s175 = sand.u32 %s27, 1
          %s176 = smul.addr %s175, 8
          %s177 = scalar_lea.vmem [#allocation2], %s176
          %s179 = ssub.s32 128, 128
          %180 = vsyncadd %s174, %s179
          %s181 = smul.addr %s17, 128
          %s182 = scalar_lea.hbm %s0, %s181
          %s184 = sshll.u32 %s177, 4
          %s185 = int_to_ptr.vmem [resolvable:$true] %s184
          %187 = dma.hbm_to_vmem [thread:$0]  %s182, 128, %s185, %s174
        $region32: #{tpu_custom_call.1} parent=27 // pred_fallthru
          _
      $region28: #{tpu_custom_call.1} parent=5 // pred_fallthru
        _
      %p188 = scmp.le.s32.totalorder 1, %s17
      %p189 = scmp.lt.s32.totalorder %s17, 5
      %p190 = pnand %p188, %p189
      %p191 = pneg %p190
      // Predicated region
      $region33: #{tpu_custom_call.1} parent=5 // pred_check
        _
      $region34: #{tpu_custom_call.1} parent=5 // pred_check_branch
        %193 = sbr.rel (%p190) target = $region36
      $region35: #{tpu_custom_call.1} parent=5 // pred_region
        %s194 = ssub.s32 %s17, 1
        %s195 = sand.u32 %s30, 1
        %s196 = scalar_lea.sflag [#allocation3], %s195
        %s197 = sand.u32 %s30, 1
        %s198 = smul.addr %s197, 8
        %s199 = scalar_lea.vmem [#allocation2], %s198
        // Predicated region
        $region37: #{tpu_custom_call.1} parent=35 // pred_check
          %p200 = pneg %p43
        $region38: #{tpu_custom_call.1} parent=35 // pred_check_branch
          %202 = sbr.rel (%p200) target = $region40
        $region39: #{tpu_custom_call.1} parent=35 // pred_region
          %203 = dma.done %s196, 128
        $region40: #{tpu_custom_call.1} parent=35 // pred_fallthru
          _
        // Predicated region
        $region41: #{tpu_custom_call.1} parent=35 // pred_check
          %p204 = pneg %p106
        $region42: #{tpu_custom_call.1} parent=35 // pred_check_branch
          %206 = sbr.rel (%p204) target = $region44
        $region43: #{tpu_custom_call.1} parent=35 // pred_region
          %207 = dma.done [#allocation6], 1024
        $region44: #{tpu_custom_call.1} parent=35 // pred_fallthru
          _
        %s208 = sand.u32 %s30, 1
        %s209 = scalar_lea.sflag [#allocation3], %s208
        %s210 = sand.u32 %s30, 1
        %s211 = smul.addr %s210, 8
        %s212 = scalar_lea.vmem [#allocation2], %s211
        %p213 = pneg %p43
        %p214 = pneg %p40
        %p215 = pneg %p64
        %p216 = pneg %p61
        %p217 = pneg %p85
        %p218 = pneg %p82
        %p219 = pneg %p106
        %p220 = pneg %p103
        %p221 = pneg %p132
        %p222 = pneg %p129
        %s223 = sand.u32 %s119, 1
        %s224 = scalar_lea.sflag [#allocation4], %s223
        %s225 = sand.u32 %s119, 1
        %s226 = smul.addr %s225, 8
        %s227 = scalar_lea.vmem [#allocation7], %s226
        %v229 = vld [vmem:[%s199] sm:$0xff]
        %v230 = vld [vmem:[#allocation5] sm:$0xf]
        %v231 = vld [vmem:[#allocation5 + $0x4] sm:$0xf]
        %v232 = vld [vmem:[#allocation5 + $0x8] sm:$0xf]
        %v233 = vld [vmem:[#allocation5 + $0xc] sm:$0xf]
        %v234 = vld [vmem:[#allocation5 + $0x10] sm:$0xf]
        %v235 = vld [vmem:[#allocation5 + $0x14] sm:$0xf]
        %v236 = vld [vmem:[#allocation5 + $0x18] sm:$0xf]
        %v237 = vld [vmem:[#allocation5 + $0x1c] sm:$0xf]
        %v238 = vld [vmem:[#allocation5 + $0x20] sm:$0xf]
        %v239 = vld [vmem:[#allocation5 + $0x24] sm:$0xf]
        %v240 = vld [vmem:[#allocation5 + $0x28] sm:$0xf]
        %v241 = vld [vmem:[#allocation5 + $0x2c] sm:$0xf]
        %v242 = vld [vmem:[#allocation5 + $0x30] sm:$0xf]
        %v243 = vld [vmem:[#allocation5 + $0x34] sm:$0xf]
        %v244 = vld [vmem:[#allocation5 + $0x38] sm:$0xf]
        %v245 = vld [vmem:[#allocation5 + $0x3c] sm:$0xf]
        %v246 = vpack.c.bf16 %v229, %v229
        %v247 = vunpack.c.l.bf16 %v246
        %v248 = vsub.f32 %v229, %v247
        %v249 = vpack.c.bf16 %v248, %v248
        %v266 = vunpack.c.l.b16 %v230
        %v267 = vunpack.c.l.b16 %v231
        %v268 = vunpack.c.l.b16 %v232
        %v269 = vunpack.c.l.b16 %v233
        %v270 = vunpack.c.l.b16 %v234
        %v271 = vunpack.c.l.b16 %v235
        %v272 = vunpack.c.l.b16 %v236
        %v273 = vunpack.c.l.b16 %v237
        %v274 = vunpack.c.l.b16 %v238
        %v275 = vunpack.c.l.b16 %v239
        %v276 = vunpack.c.l.b16 %v240
        %v277 = vunpack.c.l.b16 %v241
        %v278 = vunpack.c.l.b16 %v242
        %v279 = vunpack.c.l.b16 %v243
        %v280 = vunpack.c.l.b16 %v244
        %v281 = vunpack.c.l.b16 %v245
        %v282 = vpack.c.b16 %v267, %v266
        %v283 = vpack.c.b16 %v269, %v268
        %v284 = vpack.c.b16 %v271, %v270
        %v285 = vpack.c.b16 %v273, %v272
        %v286 = vpack.c.b16 %v275, %v274
        %v287 = vpack.c.b16 %v277, %v276
        %v288 = vpack.c.b16 %v279, %v278
        %v289 = vpack.c.b16 %v281, %v280
        %298 = vmatprep.subr.bf16.mxu0 0
        %299 = vmatpush1.bf16.msra.mxu0 %v282
        %300 = vmatprep.subr.bf16.mxu0 0
        %301 = vmatpush1.bf16.msra.mxu0 %v283
        %302 = vmatprep.subr.bf16.mxu0 0
        %303 = vmatpush1.bf16.msra.mxu0 %v284
        %304 = vmatprep.subr.bf16.mxu0 0
        %305 = vmatpush1.bf16.msra.mxu0 %v285
        %306 = vmatprep.subr.bf16.mxu0 0
        %307 = vmatpush1.bf16.msra.mxu0 %v286
        %308 = vmatprep.subr.bf16.mxu0 0
        %309 = vmatpush1.bf16.msra.mxu0 %v287
        %310 = vmatprep.subr.bf16.mxu0 0
        %311 = vmatpush1.bf16.msra.mxu0 %v288
        %312 = vmatprep.subr.bf16.mxu0 0
        %313 = vmatpush1.bf16.msra.mxu0 %v289
        %314 = vmatprep.subr.bf16.mxu0 0
        %315 = vmatpush1.bf16.msra.mxu0 0
        %316 = vmatprep.subr.bf16.mxu0 0
        %317 = vmatpush1.bf16.msra.mxu0 0
        %318 = vmatprep.subr.bf16.mxu0 0
        %319 = vmatpush1.bf16.msra.mxu0 0
        %320 = vmatprep.subr.bf16.mxu0 0
        %321 = vmatpush1.bf16.msra.mxu0 0
        %322 = vmatprep.subr.bf16.mxu0 0
        %323 = vmatpush1.bf16.msra.mxu0 0
        %324 = vmatprep.subr.bf16.mxu0 0
        %325 = vmatpush1.bf16.msra.mxu0 0
        %326 = vmatprep.subr.bf16.mxu0 0
        %327 = vmatpush1.bf16.msra.mxu0 0
        %328 = vmatprep.subr.bf16.mxu0 0
        %329 = vmatpush1.bf16.msra.mxu0 0
        %330 = vmatprep.mubr.bf16.mxu0 0
        %331 = vmatmul.mubr.bf16.gmra.mrb[0].mxu0 %v249
        %v332 = vpop.f32.mrb[0].mxu0
        %v333 = vadd.f32 0.0, %v332
        %v334 = vpop.f32.mrb[0].mxu0
        %v335 = vpop.f32.mrb[0].mxu0
        %v336 = vpop.f32.mrb[0].mxu0
        %337 = vdwg.mxu0
        %338 = vmatprep.subr.bf16.mxu0 0
        %339 = vmatpush1.bf16.msra.mxu0 %v282
        %340 = vmatprep.subr.bf16.mxu0 0
        %341 = vmatpush1.bf16.msra.mxu0 %v283
        %342 = vmatprep.subr.bf16.mxu0 0
        %343 = vmatpush1.bf16.msra.mxu0 %v284
        %344 = vmatprep.subr.bf16.mxu0 0
        %345 = vmatpush1.bf16.msra.mxu0 %v285
        %346 = vmatprep.subr.bf16.mxu0 0
        %347 = vmatpush1.bf16.msra.mxu0 %v286
        %348 = vmatprep.subr.bf16.mxu0 0
        %349 = vmatpush1.bf16.msra.mxu0 %v287
        %350 = vmatprep.subr.bf16.mxu0 0
        %351 = vmatpush1.bf16.msra.mxu0 %v288
        %352 = vmatprep.subr.bf16.mxu0 0
        %353 = vmatpush1.bf16.msra.mxu0 %v289
        %354 = vmatprep.subr.bf16.mxu0 0
        %355 = vmatpush1.bf16.msra.mxu0 0
        %356 = vmatprep.subr.bf16.mxu0 0
        %357 = vmatpush1.bf16.msra.mxu0 0
        %358 = vmatprep.subr.bf16.mxu0 0
        %359 = vmatpush1.bf16.msra.mxu0 0
        %360 = vmatprep.subr.bf16.mxu0 0
        %361 = vmatpush1.bf16.msra.mxu0 0
        %362 = vmatprep.subr.bf16.mxu0 0
        %363 = vmatpush1.bf16.msra.mxu0 0
        %364 = vmatprep.subr.bf16.mxu0 0
        %365 = vmatpush1.bf16.msra.mxu0 0
        %366 = vmatprep.subr.bf16.mxu0 0
        %367 = vmatpush1.bf16.msra.mxu0 0
        %368 = vmatprep.subr.bf16.mxu0 0
        %369 = vmatpush1.bf16.msra.mxu0 0
        %370 = vmatprep.mubr.bf16.mxu0 0
        %371 = vmatmul.mubr.bf16.gmra.mrb[0].mxu0 %v246
        %v372 = vpop.f32.mrb[0].mxu0
        %v373 = vadd.f32 %v333, %v372
        %v374 = vpop.f32.mrb[0].mxu0
        %v375 = vpop.f32.mrb[0].mxu0
        %v376 = vpop.f32.mrb[0].mxu0
        %377 = vdwg.mxu0
        %v378 = vmul.f32 %v373, 0.03125
        %v379 = vsub.f32 %v229, %v378
        %v380 = vmul.f32 %v379, %v379
        %v381 = vpack.c.bf16 %v380, %v380
        %v382 = vunpack.c.l.bf16 %v381
        %v383 = vsub.f32 %v380, %v382
        %v384 = vpack.c.bf16 %v383, %v383
        %385 = vmatprep.subr.bf16.mxu0 0
        %386 = vmatpush1.bf16.msra.mxu0 %v282
        %387 = vmatprep.subr.bf16.mxu0 0
        %388 = vmatpush1.bf16.msra.mxu0 %v283
        %389 = vmatprep.subr.bf16.mxu0 0
        %390 = vmatpush1.bf16.msra.mxu0 %v284
        %391 = vmatprep.subr.bf16.mxu0 0
        %392 = vmatpush1.bf16.msra.mxu0 %v285
        %393 = vmatprep.subr.bf16.mxu0 0
        %394 = vmatpush1.bf16.msra.mxu0 %v286
        %395 = vmatprep.subr.bf16.mxu0 0
        %396 = vmatpush1.bf16.msra.mxu0 %v287
        %397 = vmatprep.subr.bf16.mxu0 0
        %398 = vmatpush1.bf16.msra.mxu0 %v288
        %399 = vmatprep.subr.bf16.mxu0 0
        %400 = vmatpush1.bf16.msra.mxu0 %v289
        %401 = vmatprep.subr.bf16.mxu0 0
        %402 = vmatpush1.bf16.msra.mxu0 0
        %403 = vmatprep.subr.bf16.mxu0 0
        %404 = vmatpush1.bf16.msra.mxu0 0
        %405 = vmatprep.subr.bf16.mxu0 0
        %406 = vmatpush1.bf16.msra.mxu0 0
        %407 = vmatprep.subr.bf16.mxu0 0
        %408 = vmatpush1.bf16.msra.mxu0 0
        %409 = vmatprep.subr.bf16.mxu0 0
        %410 = vmatpush1.bf16.msra.mxu0 0
        %411 = vmatprep.subr.bf16.mxu0 0
        %412 = vmatpush1.bf16.msra.mxu0 0
        %413 = vmatprep.subr.bf16.mxu0 0
        %414 = vmatpush1.bf16.msra.mxu0 0
        %415 = vmatprep.subr.bf16.mxu0 0
        %416 = vmatpush1.bf16.msra.mxu0 0
        %417 = vmatprep.mubr.bf16.mxu0 0
        %418 = vmatmul.mubr.bf16.gmra.mrb[0].mxu0 %v384
        %v419 = vpop.f32.mrb[0].mxu0
        %v420 = vadd.f32 0.0, %v419
        %v421 = vpop.f32.mrb[0].mxu0
        %v422 = vpop.f32.mrb[0].mxu0
        %v423 = vpop.f32.mrb[0].mxu0
        %424 = vdwg.mxu0
        %425 = vmatprep.subr.bf16.mxu0 0
        %426 = vmatpush1.bf16.msra.mxu0 %v282
        %427 = vmatprep.subr.bf16.mxu0 0
        %428 = vmatpush1.bf16.msra.mxu0 %v283
        %429 = vmatprep.subr.bf16.mxu0 0
        %430 = vmatpush1.bf16.msra.mxu0 %v284
        %431 = vmatprep.subr.bf16.mxu0 0
        %432 = vmatpush1.bf16.msra.mxu0 %v285
        %433 = vmatprep.subr.bf16.mxu0 0
        %434 = vmatpush1.bf16.msra.mxu0 %v286
        %435 = vmatprep.subr.bf16.mxu0 0
        %436 = vmatpush1.bf16.msra.mxu0 %v287
        %437 = vmatprep.subr.bf16.mxu0 0
        %438 = vmatpush1.bf16.msra.mxu0 %v288
        %439 = vmatprep.subr.bf16.mxu0 0
        %440 = vmatpush1.bf16.msra.mxu0 %v289
        %441 = vmatprep.subr.bf16.mxu0 0
        %442 = vmatpush1.bf16.msra.mxu0 0
        %443 = vmatprep.subr.bf16.mxu0 0
        %444 = vmatpush1.bf16.msra.mxu0 0
        %445 = vmatprep.subr.bf16.mxu0 0
        %446 = vmatpush1.bf16.msra.mxu0 0
        %447 = vmatprep.subr.bf16.mxu0 0
        %448 = vmatpush1.bf16.msra.mxu0 0
        %449 = vmatprep.subr.bf16.mxu0 0
        %450 = vmatpush1.bf16.msra.mxu0 0
        %451 = vmatprep.subr.bf16.mxu0 0
        %452 = vmatpush1.bf16.msra.mxu0 0
        %453 = vmatprep.subr.bf16.mxu0 0
        %454 = vmatpush1.bf16.msra.mxu0 0
        %455 = vmatprep.subr.bf16.mxu0 0
        %456 = vmatpush1.bf16.msra.mxu0 0
        %457 = vmatprep.mubr.bf16.mxu0 0
        %458 = vmatmul.mubr.bf16.gmra.mrb[0].mxu0 %v381
        %v459 = vpop.f32.mrb[0].mxu0
        %v460 = vadd.f32 %v420, %v459
        %v461 = vpop.f32.mrb[0].mxu0
        %v462 = vpop.f32.mrb[0].mxu0
        %v463 = vpop.f32.mrb[0].mxu0
        %464 = vdwg.mxu0
        %v465 = vmul.f32 %v460, 0.03125
        %v466 = vmax.f32 %v465, 0.0
        %v467 = vadd.f32 %v466, 1e-05
        %v468 = vrsqrt.pop %v467
        %v469 = vmul.f32 %v379, %v468
        %v470 = vld [vmem:[%s1] sm:$0x1]
        %v472 = vlaneseq
        %v473 = vshrl.u32 %v472, 7
        %v474 = vsub.s32 0, %v473
        %v475 = vrot.slane %v470, %v474
        %v477 = vmul.f32 %v469, %v475
        %v478 = vld [vmem:[%s2] sm:$0x1]
        %v480 = vlaneseq
        %v481 = vshrl.u32 %v480, 7
        %v482 = vsub.s32 0, %v481
        %v483 = vrot.slane %v478, %v482
        %v485 = vadd.f32 %v477, %v483
        %486 = vst [vmem:[%s227] sm:$0xff] %v485
        %s487 = sand.u32 %s119, 1
        %s488 = scalar_lea.sflag [#allocation4], %s487
        %s489 = sand.u32 %s119, 1
        %s490 = smul.addr %s489, 8
        %s491 = scalar_lea.vmem [#allocation7], %s490
        // Predicated region
        $region45: #{tpu_custom_call.1} parent=35 // pred_check
          %p492 = pneg %p129
        $region46: #{tpu_custom_call.1} parent=35 // pred_check_branch
          %494 = sbr.rel (%p492) target = $region48
        $region47: #{tpu_custom_call.1} parent=35 // pred_region
          %s496 = ssub.s32 128, 128
          %497 = vsyncadd %s488, %s496
          %s498 = smul.addr %s22, 128
          %s499 = scalar_lea.hbm %s4, %s498
          %s501 = sshll.u32 %s491, 4
          %s502 = int_to_ptr.vmem [resolvable:$true] %s501
          %504 = dma.vmem_to_hbm [thread:$0]  %s502, 128, %s499, %s488
        $region48: #{tpu_custom_call.1} parent=35 // pred_fallthru
          _
      $region36: #{tpu_custom_call.1} parent=5 // pred_fallthru
        _
      %p505 = scmp.le.s32.totalorder 2, %s17
      // Predicated region
      $region49: #{tpu_custom_call.1} parent=5 // pred_check
        %p506 = pneg %p505
      $region50: #{tpu_custom_call.1} parent=5 // pred_check_branch
        %508 = sbr.rel (%p506) target = $region52
      $region51: #{tpu_custom_call.1} parent=5 // pred_region
        %s509 = ssub.s32 %s17, 2
        // Predicated region
        $region53: #{tpu_custom_call.1} parent=51 // pred_check
          %p510 = pneg %p135
        $region54: #{tpu_custom_call.1} parent=51 // pred_check_branch
          %512 = sbr.rel (%p510) target = $region56
        $region55: #{tpu_custom_call.1} parent=51 // pred_region
          %s513 = sand.u32 %s120, 1
          %s514 = scalar_lea.sflag [#allocation4], %s513
          %s515 = sand.u32 %s120, 1
          %s516 = smul.addr %s515, 8
          %s517 = scalar_lea.vmem [#allocation7], %s516
          %518 = dma.done %s514, 128
        $region56: #{tpu_custom_call.1} parent=51 // pred_fallthru
          _
      $region52: #{tpu_custom_call.1} parent=5 // pred_fallthru
        _
    $region6: #{tpu_custom_call.1} parent=1 // loop_footer
      %s21 = sadd.s32 1, %s17
    $region7: #{tpu_custom_call.1} parent=1 // loop_footer_branch
      %16 = sbr.rel target = $region3
    $region8: #{tpu_custom_call.1} parent=1 // loop_exit
      _
    %519 = vsyncpa [#allocation3], 1
    %s520 = scalar_lea.sflag [#allocation3], 1
    %521 = vsyncpa %s520, 1
    %522 = vsyncpa [#allocation6], 1
    %523 = vsyncpa [#allocation4], 1
    %s524 = scalar_lea.sflag [#allocation4], 1
    %525 = vsyncpa %s524, 1

</llo_original>
